<compile_context>
chip_gen: v5e
topology: v5e:2x2
jax: 0.10.0
libtpu: 0.0.40
codegen_flags: <defaults>
</compile_context>

<pallas_src>
from functools import partial
import math

import jax
import jax.numpy as jnp
from jax.experimental import pallas as pl
from jax.experimental.pallas import tpu as pltpu


# ----------------------------------------------------------------------------- utils


def _round_up(x, m):
    return (x + m - 1) // m * m


def _ceil_div(a, b):
    return -(-a // b)


def _hw_params():
    """(target_block_bytes, vmem_limit_bytes) derived from the chip's VMEM size."""
    phys = 64 << 20  # conservative default (v7x per-TC) when unknown
    try:
        info = pltpu.get_tpu_info()
        v = getattr(info, "vmem_capacity_bytes", None)
        if isinstance(v, int) and v > 0:
            phys = int(v)
    except Exception:
        pass
    # 4 MiB blocks on v7x (64 MiB VMEM), 8 MiB on v5e/v6e (128 MiB VMEM).
    target_block = max(4 << 20, min(8 << 20, phys // 16))
    # Leave headroom for the f32 temporaries created inside the kernel body.
    vmem_limit = int(min(phys - (16 << 20), 96 << 20))
    return target_block, vmem_limit


def _num_cores():
    """Best-effort TensorCore count per device; defaults to 1 (v5e/v6e)."""
    try:
        info = pltpu.get_tpu_info()
        for attr in ("num_cores", "core_count", "num_tensorcores",
                     "tensorcores_per_chip"):
            v = getattr(info, attr, None)
            if isinstance(v, int) and v > 0:
                return int(v)
    except Exception:
        pass
    try:
        d = jax.devices()[0]
        for attr in ("num_cores", "core_count"):
            v = getattr(d, attr, None)
            if isinstance(v, int) and v > 0:
                return int(v)
    except Exception:
        pass
    return 1


def _pick_rows(n_rows, row_bytes, target_block_bytes, itemsize, num_cores=1):
    """Largest row tile (aligned to the dtype's native sublane packing) within the
    VMEM block budget.  Only multi-TensorCore parts trade tile size for extra
    grid steps (and then keep the step count balanced across cores)."""
    sub = max(8, 32 // max(1, itemsize))  # 8 for f32, 16 for bf16, 32 for int8
    if n_rows <= 0:
        return 1
    rows = int(target_block_bytes // max(1, row_bytes))
    rows = max(sub, rows - rows % sub)
    if rows >= n_rows:
        return n_rows  # single full-extent block (always a legal block dim)

    if num_cores > 1:
        def steps(r):
            return _ceil_div(n_rows, r)

        while rows > 4 * sub and steps(rows) < num_cores:
            half = rows // 2
            rows = max(sub, half - half % sub)
        if steps(rows) % num_cores != 0:
            tgt_steps = _round_up(steps(rows), num_cores)
            r2 = _round_up(_ceil_div(n_rows, tgt_steps), sub)
            if sub <= r2 < n_rows and steps(r2) % num_cores == 0:
                rows = r2
    return rows


# ----------------------------------------------------------------------------- kernels


def _ln_rows_kernel(x_ref, w_ref, b_ref, o_ref, *, eps):
    # x_ref: (rows, C); normalize each row over the lane (C) axis.
    x = x_ref[...].astype(jnp.float32)
    mu = jnp.mean(x, axis=-1, keepdims=True)
    xc = x - mu
    var = jnp.mean(xc * xc, axis=-1, keepdims=True)
    inv = jax.lax.rsqrt(var + eps)
    y = xc * inv * w_ref[...].astype(jnp.float32) + b_ref[...].astype(jnp.float32)
    o_ref[...] = y.astype(o_ref.dtype)


def _ln_packed_kernel(x_ref, w_ref, b_ref, m_ref, o_ref, *, eps, c):
    # x_ref: (rows, width); every lane-dense row holds width // c complete LN
    # groups of size c.  Group mean/var use the resident block-diagonal matrix
    # m_ref (DMA'd once, constant index_map): (x @ m) broadcasts each group's sum
    # to every lane of that group.  HIGHEST precision keeps f32 accuracy; the
    # extra MXU passes hide under HBM time in this mem-bound kernel.
    x = x_ref[...].astype(jnp.float32)
    m = m_ref[...]
    inv_c = 1.0 / c
    mu = jnp.dot(x, m, precision=jax.lax.Precision.HIGHEST,
                 preferred_element_type=jnp.float32) * inv_c
    xc = x - mu
    var = jnp.dot(xc * xc, m, precision=jax.lax.Precision.HIGHEST,
                  preferred_element_type=jnp.float32) * inv_c
    inv = jax.lax.rsqrt(var + eps)
    y = xc * inv * w_ref[...].astype(jnp.float32) + b_ref[...].astype(jnp.float32)
    o_ref[...] = y.astype(o_ref.dtype)


def _ln_cfirst_kernel(x_ref, w_ref, b_ref, o_ref, *, eps):
    # x_ref: (1, C, hw_tile); reduce over the channel (sublane) axis, spatial on
    # lanes -> lane-dense loads/stores and no host-side transposes.
    x = x_ref[...].astype(jnp.float32)
    mu = jnp.mean(x, axis=1, keepdims=True)
    xc = x - mu
    var = jnp.mean(xc * xc, axis=1, keepdims=True)
    inv = jax.lax.rsqrt(var + eps)
    y = xc * inv * w_ref[...].astype(jnp.float32) + b_ref[...].astype(jnp.float32)
    o_ref[...] = y.astype(o_ref.dtype)


# ----------------------------------------------------------------------------- wrappers


def _layer_norm_channels_last(x, weight, bias, eps):
    C = x.shape[-1]
    N = math.prod(x.shape[:-1])
    total = N * C
    itemsize = jnp.dtype(x.dtype).itemsize
    target_block, vmem_limit = _hw_params()
    num_cores = _num_cores()

    # Lane-dense packed path for small C: width = lcm(C, 128), capped at 512.
    packed_width = None
    if 0 < C < 128:
        lcm = C * 128 // math.gcd(C, 128)
        if lcm <= 512:
            packed_width = lcm

    if packed_width is not None:
        width = packed_width
        pad = (-total) % width            # pad is always a multiple of C
        x_flat = x.reshape(-1)
        if pad:
            x_flat = jnp.pad(x_flat, (0, pad))
        n_rows = (total + pad) // width
        x2 = x_flat.reshape(n_rows, width)
        reps = width // C
        w2 = jnp.tile(weight.reshape(-1).astype(jnp.float32), reps).reshape(1, width)
        b2 = jnp.tile(bias.reshape(-1).astype(jnp.float32), reps).reshape(1, width)
        # Block-diagonal group-sum matrix, built once and kept VMEM-resident.
        g = jnp.arange(width, dtype=jnp.int32) // C
        m2 = (g[:, None] == g[None, :]).astype(jnp.float32)
        kernel = partial(_ln_packed_kernel, eps=eps, c=C)
        extra_inputs = [m2]
        extra_specs = [pl.BlockSpec((width, width), lambda i: (0, 0))]
    else:
        width = C
        n_rows = N
        pad = 0
        x2 = x.reshape(n_rows, width)
        w2 = weight.reshape(1, width).astype(jnp.float32)
        b2 = bias.reshape(1, width).astype(jnp.float32)
        kernel = partial(_ln_rows_kernel, eps=eps)
        extra_inputs = []
        extra_specs = []

    rows = _pick_rows(n_rows, width * itemsize, target_block, itemsize, num_cores)
    grid = (pl.cdiv(n_rows, rows),)

    out = pl.pallas_call(
        kernel,
        out_shape=jax.ShapeDtypeStruct((n_rows, width), x.dtype),
        grid_spec=pltpu.PrefetchScalarGridSpec(
            num_scalar_prefetch=0,
            grid=grid,
            in_specs=[
                pl.BlockSpec((rows, width), lambda i: (i, 0)),
                pl.BlockSpec((1, width), lambda i: (0, 0)),
                pl.BlockSpec((1, width), lambda i: (0, 0)),
            ] + extra_specs,
            out_specs=pl.BlockSpec((rows, width), lambda i: (i, 0)),
        ),
        compiler_params=pltpu.CompilerParams(
            dimension_semantics=("parallel",),
            vmem_limit_bytes=vmem_limit,
        ),
    )(x2, w2, b2, *extra_inputs)

    if pad:
        out = out.reshape(-1)[:total]
    return out.reshape(x.shape)


def _layer_norm_channels_first(x, weight, bias, eps):
    B, C, H, W = x.shape
    HW = H * W
    itemsize = jnp.dtype(x.dtype).itemsize
    target_block, vmem_limit = _hw_params()

    x3 = x.reshape(B, C, HW)
    w3 = weight.reshape(1, C, 1).astype(jnp.float32)
    b3 = bias.reshape(1, C, 1).astype(jnp.float32)

    hw_tile = int(target_block // max(1, C * itemsize))
    if hw_tile >= HW:
        hw_tile = HW                       # single full-extent block along spatial
    else:
        hw_tile = max(128, (hw_tile // 128) * 128)
        hw_tile = min(hw_tile, HW)

    grid = (B, pl.cdiv(HW, hw_tile))

    out = pl.pallas_call(
        partial(_ln_cfirst_kernel, eps=eps),
        out_shape=jax.ShapeDtypeStruct((B, C, HW), x.dtype),
        grid_spec=pltpu.PrefetchScalarGridSpec(
            num_scalar_prefetch=0,
            grid=grid,
            in_specs=[
                pl.BlockSpec((1, C, hw_tile), lambda b, j: (b, 0, j)),
                pl.BlockSpec((1, C, 1), lambda b, j: (0, 0, 0)),
                pl.BlockSpec((1, C, 1), lambda b, j: (0, 0, 0)),
            ],
            out_specs=pl.BlockSpec((1, C, hw_tile), lambda b, j: (b, 0, j)),
        ),
        compiler_params=pltpu.CompilerParams(
            dimension_semantics=("parallel", "parallel"),
            vmem_limit_bytes=vmem_limit,
        ),
    )(x3, w3, b3)
    return out.reshape(B, C, H, W)


class LayerNormPallas:
    """Mirror of the PyTorch LayerNorm module (ones weight, zeros bias)."""

    def __init__(self, normalized_shape, eps=1e-6, data_format="channels_last"):
        if data_format not in ("channels_last", "channels_first"):
            raise NotImplementedError
        self.weight = jnp.ones((normalized_shape,), jnp.float32)
        self.bias = jnp.zeros((normalized_shape,), jnp.float32)
        self.eps = float(eps)
        self.data_format = data_format
        self.normalized_shape = normalized_shape

    def __call__(self, x):
        C = self.normalized_shape
        if self.data_format == "channels_last":
            assert x.shape[-1] == C
            return _layer_norm_channels_last(x, self.weight, self.bias, self.eps)
        else:
            assert x.ndim == 4 and x.shape[1] == C
            return _layer_norm_channels_first(x, self.weight, self.bias, self.eps)


# ----------------------------------------------------------------------------- references


def _ref_channels_last(x, w, b, eps):
    mu = jnp.mean(x, axis=-1, keepdims=True)
    var = jnp.mean((x - mu) ** 2, axis=-1, keepdims=True)
    return (x - mu) / jnp.sqrt(var + eps) * w + b


def _ref_channels_first(x, w, b, eps):
    u = jnp.mean(x, axis=1, keepdims=True)
    s = jnp.mean((x - u) ** 2, axis=1, keepdims=True)
    xn = (x - u) / jnp.sqrt(s + eps)
    return w[:, None, None] * xn + b[:, None, None]


if __name__ == "__main__":
    key = jax.random.PRNGKey(0)
    k1, k2 = jax.random.split(key)

    B, C, H, W = 2, 4, 16, 16

    # channels_last: (B, H, W, C) with small C -> packed lane-dense path.
    x_cl = jax.random.normal(k1, (B, H, W, C), jnp.float32)
    ln_cl = LayerNormPallas(C, eps=1e-6, data_format="channels_last")
    y_cl = jax.block_until_ready(ln_cl(x_cl))
    ref_cl = _ref_channels_last(x_cl, ln_cl.weight, ln_cl.bias, ln_cl.eps)
    assert y_cl.shape == x_cl.shape
    assert jnp.allclose(y_cl, ref_cl, atol=1e-5, rtol=1e-5)

    # channels_first: (B, C, H, W) -> sublane-reduction path (no transposes).
    x_cf = jax.random.normal(k2, (B, C, H, W), jnp.float32)
    ln_cf = LayerNormPallas(C, eps=1e-6, data_format="channels_first")
    y_cf = jax.block_until_ready(ln_cf(x_cf))
    ref_cf = _ref_channels_first(x_cf, ln_cf.weight, ln_cf.bias, ln_cf.eps)
    assert y_cf.shape == x_cf.shape
    assert jnp.allclose(y_cf, ref_cf, atol=1e-5, rtol=1e-5)

    # channels_last with wide C -> generic lane-reduction path.
    C2 = 256
    x_wide = jax.random.normal(k1, (2, 8, C2), jnp.float32)
    ln_wide = LayerNormPallas(C2, eps=1e-6, data_format="channels_last")
    y_wide = jax.block_until_ready(ln_wide(x_wide))
    ref_wide = _ref_channels_last(x_wide, ln_wide.weight, ln_wide.bias, ln_wide.eps)
    assert jnp.allclose(y_wide, ref_wide, atol=1e-5, rtol=1e-5)

    # channels_last with C that does not divide 128 -> widened packed path
    # (width = lcm(48, 128) = 384) exercising the wrapper-side padding.
    C3 = 48
    x_odd = jax.random.normal(k2, (2, 3, 5, C3), jnp.float32)
    ln_odd = LayerNormPallas(C3, eps=1e-6, data_format="channels_last")
    y_odd = jax.block_until_ready(ln_odd(x_odd))
    ref_odd = _ref_channels_last(x_odd, ln_odd.weight, ln_odd.bias, ln_odd.eps)
    assert jnp.allclose(y_odd, ref_odd, atol=1e-5, rtol=1e-5)

    print("KERNEL_OK")
</pallas_src>

<mosaic_0001>
module attributes {stable_mosaic.version = 11 : i64} {
  func.func @_ln_packed_kernel(%arg0: i32, %arg1: memref<16x128xf32, #tpu.memory_space<vmem>>, %arg2: memref<1x128xf32, #tpu.memory_space<vmem>>, %arg3: memref<1x128xf32, #tpu.memory_space<vmem>>, %arg4: memref<128x128xf32, #tpu.memory_space<vmem>>, %arg5: memref<16x128xf32, #tpu.memory_space<vmem>>) attributes {dimension_semantics = [#tpu.dimension_semantics<parallel>], iteration_bounds = array<i64: 1>, scalar_prefetch = 0 : i64, scratch_operands = 0 : i64, tpu.core_type = #tpu.core_type<tc>, window_params = [{transform_indices = @transform_0, window_bounds = array<i64: 16, 128>}, {pipeline_mode = #tpu.pipeline_mode<synchronous>, transform_indices = @transform_1, window_bounds = array<i64: 1, 128>}, {pipeline_mode = #tpu.pipeline_mode<synchronous>, transform_indices = @transform_2, window_bounds = array<i64: 1, 128>}, {pipeline_mode = #tpu.pipeline_mode<synchronous>, transform_indices = @transform_3, window_bounds = array<i64: 128, 128>}, {transform_indices = @transform_4, window_bounds = array<i64: 16, 128>}]} {
    %c0 = arith.constant 0 : index
    %c0_0 = arith.constant 0 : index
    %0 = vector.load %arg1[%c0, %c0_0] : memref<16x128xf32, #tpu.memory_space<vmem>>, vector<16x128xf32>
    %c0_1 = arith.constant 0 : index
    %c0_2 = arith.constant 0 : index
    %1 = vector.load %arg4[%c0_1, %c0_2] : memref<128x128xf32, #tpu.memory_space<vmem>>, vector<128x128xf32>
    %cst = arith.constant dense<0.000000e+00> : vector<16x128xf32>
    %2 = tpu.matmul %0, %1, %cst {dimension_numbers = #tpu.dot_dimension_numbers<[1], [0], [0], [1], [0, 0, 1, 1], [], []>, precision = #tpu.contract_precision<fp32>} : vector<16x128xf32>, vector<128x128xf32>, vector<16x128xf32> -> vector<16x128xf32>
    %cst_3 = arith.constant 2.500000e-01 : f32
    %3 = vector.broadcast %cst_3 : f32 to vector<16x128xf32>
    %4 = arith.mulf %2, %3 : vector<16x128xf32>
    %5 = arith.subf %0, %4 : vector<16x128xf32>
    %6 = arith.mulf %5, %5 : vector<16x128xf32>
    %cst_4 = arith.constant dense<0.000000e+00> : vector<16x128xf32>
    %7 = tpu.matmul %6, %1, %cst_4 {dimension_numbers = #tpu.dot_dimension_numbers<[1], [0], [0], [1], [0, 0, 1, 1], [], []>, precision = #tpu.contract_precision<fp32>} : vector<16x128xf32>, vector<128x128xf32>, vector<16x128xf32> -> vector<16x128xf32>
    %cst_5 = arith.constant 2.500000e-01 : f32
    %8 = vector.broadcast %cst_5 : f32 to vector<16x128xf32>
    %9 = arith.mulf %7, %8 : vector<16x128xf32>
    %cst_6 = arith.constant 9.99999997E-7 : f32
    %10 = vector.broadcast %cst_6 : f32 to vector<16x128xf32>
    %11 = arith.addf %9, %10 : vector<16x128xf32>
    %12 = math.rsqrt %11 : vector<16x128xf32>
    %13 = arith.mulf %5, %12 : vector<16x128xf32>
    %c0_7 = arith.constant 0 : index
    %c0_8 = arith.constant 0 : index
    %14 = vector.load %arg2[%c0_7, %c0_8] : memref<1x128xf32, #tpu.memory_space<vmem>>, vector<1x128xf32>
    %15 = vector.broadcast %14 : vector<1x128xf32> to vector<16x128xf32>
    %16 = arith.mulf %13, %15 : vector<16x128xf32>
    %c0_9 = arith.constant 0 : index
    %c0_10 = arith.constant 0 : index
    %17 = vector.load %arg3[%c0_9, %c0_10] : memref<1x128xf32, #tpu.memory_space<vmem>>, vector<1x128xf32>
    %18 = vector.broadcast %17 : vector<1x128xf32> to vector<16x128xf32>
    %19 = arith.addf %16, %18 : vector<16x128xf32>
    %c0_11 = arith.constant 0 : index
    %c0_12 = arith.constant 0 : index
    %20 = vector.load %arg5[%c0_11, %c0_12] : memref<16x128xf32, #tpu.memory_space<vmem>>, vector<16x128xf32>
    tpu.vector_store %arg5[%c0_11, %c0_12], %19 {strides = array<i32>} : memref<16x128xf32, #tpu.memory_space<vmem>>, vector<16x128xf32>,
    return
  }
  func.func @transform_0(%arg0: i32) -> (i32, i32) {
    %c0_i32 = arith.constant 0 : i32
    %c0_i32_0 = arith.constant 0 : i32
    return %arg0, %c0_i32 : i32, i32
  }
  func.func @transform_1(%arg0: i32) -> (i32, i32) {
    %c0_i32 = arith.constant 0 : i32
    %c0_i32_0 = arith.constant 0 : i32
    %c0_i32_1 = arith.constant 0 : i32
    return %c0_i32, %c0_i32_0 : i32, i32
  }
  func.func @transform_2(%arg0: i32) -> (i32, i32) {
    %c0_i32 = arith.constant 0 : i32
    %c0_i32_0 = arith.constant 0 : i32
    %c0_i32_1 = arith.constant 0 : i32
    return %c0_i32, %c0_i32_0 : i32, i32
  }
  func.func @transform_3(%arg0: i32) -> (i32, i32) {
    %c0_i32 = arith.constant 0 : i32
    %c0_i32_0 = arith.constant 0 : i32
    %c0_i32_1 = arith.constant 0 : i32
    return %c0_i32, %c0_i32_0 : i32, i32
  }
  func.func @transform_4(%arg0: i32) -> (i32, i32) {
    %c0_i32 = arith.constant 0 : i32
    %c0_i32_0 = arith.constant 0 : i32
    return %arg0, %c0_i32 : i32, i32
  }
}

</mosaic_0001>

<llo_original>
// kernel: tpu_custom_call.1
$region0: #{tpu_custom_call.1}
  #allocation0 [shape = 'u32[]', space=smem, size = 0x4, offset = 0x4, fixed_abs, tag = 'smem constant byte address 0x4 - core index']
  #allocation1 [shape = 'u32[72,128]{1,0:T(1,128)}', space=vmem, size = 0x9000, scoped, tag = 'internal scratch']
  %s0 = inlined_call_operand.hbm [shape: f32[16,128], index: 0, kind: input, shape index: {}]
  %s1 = inlined_call_operand.hbm [shape: f32[1,128], index: 1, kind: input, shape index: {}]
  %s2 = inlined_call_operand.vmem [shape: f32[1,128], index: 2, kind: input, shape index: {}]
  %s3 = inlined_call_operand.hbm [shape: f32[128,128], index: 3, kind: input, shape index: {}]
  %s4 = inlined_call_operand.hbm [shape: f32[16,128], index: 4, kind: output, shape index: {}]
  %s5 = sld [smem:[#allocation0]]
  $region38: #{tpu_custom_call.1} parent=0
    _
  %s7 = ssub.s32 1, %s5
  %s8 = scalar_select 0, %s7, %s5
  $region1: #{tpu_custom_call.1} parent=0
    #allocation2 [shape = 'u8[8192]{0}', space=vmem, size = 0x2000, scoped, tag = 'input window, operand 0, single buffered']
    #allocation3 [shape = 's32[1]{0}', space=sflag, size = 0x4, scoped, tag = 'scoped memory for tpu_custom_call.1']
    #allocation4 [shape = 's32[1]{0}', space=sflag, size = 0x4, scoped, tag = 'scoped memory for tpu_custom_call.1']
    #allocation5 [shape = 'u8[512]{0}', space=vmem, size = 0x400, scoped, tag = 'input window, operand 1, single buffered']
    #allocation6 [shape = 's32[1]{0}', space=sflag, size = 0x4, scoped, tag = 'scoped memory for tpu_custom_call.1']
    #allocation7 [shape = 'u8[65536]{0}', space=vmem, size = 0x10000, scoped, tag = 'input window, operand 3, single buffered']
    #allocation8 [shape = 'u8[8192]{0}', space=vmem, size = 0x2000, scoped, tag = 'output window, operand 0, single buffered']
    %9 = vsyncpa [#allocation3], 0
    %10 = vsyncpa [#allocation6], 0
    %11 = vsyncpa [#allocation4], 0
    // Predicated region
    $region2: #{tpu_custom_call.1} parent=1 // pred_check
      _
    $region3: #{tpu_custom_call.1} parent=1 // pred_check_branch
      %13 = sbr.rel (0) target = $region5
    $region4: #{tpu_custom_call.1} parent=1 // pred_region
      %15 = vsyncadd [#allocation3], 0
      %s16 = sshll.u32 %s0, 4
      %s17 = int_to_ptr.hbm [resolvable:$true] %s16
      %s18 = sshll.u32 [#allocation2], 4
      %s19 = int_to_ptr.vmem [resolvable:$true] %s18
      %24 = dma.hbm_to_vmem [thread:$0]  %s17, 256, %s19, [#allocation3], 128, 128, 8
    $region5: #{tpu_custom_call.1} parent=1 // pred_fallthru
      _
    // Predicated region
    $region6: #{tpu_custom_call.1} parent=1 // pred_check
      _
    $region7: #{tpu_custom_call.1} parent=1 // pred_check_branch
      %26 = sbr.rel (0) target = $region9
    $region8: #{tpu_custom_call.1} parent=1 // pred_region
      %28 = vsyncadd [#allocation6], 0
      %s30 = sshll.u32 %s1, 4
      %s31 = int_to_ptr.hbm [resolvable:$true] %s30
      %s32 = sshll.u32 [#allocation5], 4
      %s33 = int_to_ptr.vmem [resolvable:$true] %s32
      %35 = dma.hbm_to_vmem [thread:$0]  %s31, 16, %s33, [#allocation6]
    $region9: #{tpu_custom_call.1} parent=1 // pred_fallthru
      _
    // Predicated region
    $region10: #{tpu_custom_call.1} parent=1 // pred_check
      _
    $region11: #{tpu_custom_call.1} parent=1 // pred_check_branch
      %37 = sbr.rel (0) target = $region13
    $region12: #{tpu_custom_call.1} parent=1 // pred_region
      _
    $region13: #{tpu_custom_call.1} parent=1 // pred_fallthru
      _
    // Predicated region
    $region14: #{tpu_custom_call.1} parent=1 // pred_check
      _
    $region15: #{tpu_custom_call.1} parent=1 // pred_check_branch
      %39 = sbr.rel (0) target = $region17
    $region16: #{tpu_custom_call.1} parent=1 // pred_region
      %41 = vsyncadd [#allocation6], 0
      %s42 = sshll.u32 %s3, 4
      %s43 = int_to_ptr.hbm [resolvable:$true] %s42
      %s44 = sshll.u32 [#allocation7], 4
      %s45 = int_to_ptr.vmem [resolvable:$true] %s44
      %50 = dma.hbm_to_vmem [thread:$0]  %s43, 2048, %s45, [#allocation6], 128, 128, 8
    $region17: #{tpu_custom_call.1} parent=1 // pred_fallthru
      _
    // Predicated region
    $region18: #{tpu_custom_call.1} parent=1 // pred_check
      _
    $region19: #{tpu_custom_call.1} parent=1 // pred_check_branch
      %52 = sbr.rel (0) target = $region21
    $region20: #{tpu_custom_call.1} parent=1 // pred_region
      %54 = dma.done [#allocation3], 256
    $region21: #{tpu_custom_call.1} parent=1 // pred_fallthru
      _
    // Predicated region
    $region22: #{tpu_custom_call.1} parent=1 // pred_check
      _
    $region23: #{tpu_custom_call.1} parent=1 // pred_check_branch
      %56 = sbr.rel (0) target = $region25
    $region24: #{tpu_custom_call.1} parent=1 // pred_region
      %58 = dma.done [#allocation6], 16
    $region25: #{tpu_custom_call.1} parent=1 // pred_fallthru
      _
    // Predicated region
    $region26: #{tpu_custom_call.1} parent=1 // pred_check
      _
    $region27: #{tpu_custom_call.1} parent=1 // pred_check_branch
      %60 = sbr.rel (0) target = $region29
    $region28: #{tpu_custom_call.1} parent=1 // pred_region
      %62 = dma.done [#allocation6], 2048
    $region29: #{tpu_custom_call.1} parent=1 // pred_fallthru
      _
    %v63 = vld [vmem:[#allocation2] sm:$0xff]
    %v64 = vld [vmem:[#allocation2 + $0x8] sm:$0xff]
    %v65 = vld [vmem:[#allocation7] sm:$0xff]
    %v66 = vld [vmem:[#allocation7 + $0x8] sm:$0xff]
    %v67 = vld [vmem:[#allocation7 + $0x10] sm:$0xff]
    %v68 = vld [vmem:[#allocation7 + $0x18] sm:$0xff]
    %v69 = vld [vmem:[#allocation7 + $0x20] sm:$0xff]
    %v70 = vld [vmem:[#allocation7 + $0x28] sm:$0xff]
    %v71 = vld [vmem:[#allocation7 + $0x30] sm:$0xff]
    %v72 = vld [vmem:[#allocation7 + $0x38] sm:$0xff]
    %v73 = vld [vmem:[#allocation7 + $0x40] sm:$0xff]
    %v74 = vld [vmem:[#allocation7 + $0x48] sm:$0xff]
    %v75 = vld [vmem:[#allocation7 + $0x50] sm:$0xff]
    %v76 = vld [vmem:[#allocation7 + $0x58] sm:$0xff]
    %v77 = vld [vmem:[#allocation7 + $0x60] sm:$0xff]
    %v78 = vld [vmem:[#allocation7 + $0x68] sm:$0xff]
    %v79 = vld [vmem:[#allocation7 + $0x70] sm:$0xff]
    %v80 = vld [vmem:[#allocation7 + $0x78] sm:$0xff]
    %v81 = vand.u32 %v80, 4294901760
    %82 = vmatpush.msra.mxu0 %v81
    %v83 = vand.u32 %v79, 4294901760
    %84 = vmatpush.msra.mxu0 %v83
    %v85 = vand.u32 %v78, 4294901760
    %86 = vmatpush.msra.mxu0 %v85
    %v87 = vand.u32 %v77, 4294901760
    %88 = vmatpush.msra.mxu0 %v87
    %v89 = vand.u32 %v76, 4294901760
    %90 = vmatpush.msra.mxu0 %v89
    %v91 = vand.u32 %v75, 4294901760
    %92 = vmatpush.msra.mxu0 %v91
    %v93 = vand.u32 %v74, 4294901760
    %94 = vmatpush.msra.mxu0 %v93
    %v95 = vand.u32 %v73, 4294901760
    %96 = vmatpush.msra.mxu0 %v95
    %v97 = vand.u32 %v72, 4294901760
    %98 = vmatpush.msra.mxu0 %v97
    %v99 = vand.u32 %v71, 4294901760
    %100 = vmatpush.msra.mxu0 %v99
    %v101 = vand.u32 %v70, 4294901760
    %102 = vmatpush.msra.mxu0 %v101
    %v103 = vand.u32 %v69, 4294901760
    %104 = vmatpush.msra.mxu0 %v103
    %v105 = vand.u32 %v68, 4294901760
    %106 = vmatpush.msra.mxu0 %v105
    %v107 = vand.u32 %v67, 4294901760
    %108 = vmatpush.msra.mxu0 %v107
    %v109 = vand.u32 %v66, 4294901760
    %110 = vmatpush.msra.mxu0 %v109
    %v111 = vand.u32 %v65, 4294901760
    %112 = vmatpush.msra.mxu0 %v111
    %v113 = vand.u32 %v63, 4294901760
    %v114 = vsub.f32 %v63, %v113
    %v115 = vand.u32 %v114, 4294901760
    %v116 = vsub.f32 %v114, %v115
    %v117 = vand.u32 %v116, 4294901760
    %118 = vmatmul.f32.gmra.mxu0 %v117
    %v119 = vpop.f32.mrf.mxu0
    %v120 = vadd.f32 0.0, %v119
    %v121 = vand.u32 %v64, 4294901760
    %v122 = vsub.f32 %v64, %v121
    %v123 = vand.u32 %v122, 4294901760
    %v124 = vsub.f32 %v122, %v123
    %v125 = vand.u32 %v124, 4294901760
    %126 = vmatmul.f32.gmra.mxu0 %v125
    %v127 = vpop.f32.mrf.mxu0
    %v128 = vadd.f32 0.0, %v127
    %129 = vdwg.mxu0
    %v130 = vand.u32 %v80, 4294901760
    %v131 = vsub.f32 %v80, %v130
    %v132 = vand.u32 %v131, 4294901760
    %v133 = vsub.f32 %v131, %v132
    %v134 = vand.u32 %v133, 4294901760
    %135 = vmatpush.msra.mxu0 %v134
    %v136 = vand.u32 %v79, 4294901760
    %v137 = vsub.f32 %v79, %v136
    %v138 = vand.u32 %v137, 4294901760
    %v139 = vsub.f32 %v137, %v138
    %v140 = vand.u32 %v139, 4294901760
    %141 = vmatpush.msra.mxu0 %v140
    %v142 = vand.u32 %v78, 4294901760
    %v143 = vsub.f32 %v78, %v142
    %v144 = vand.u32 %v143, 4294901760
    %v145 = vsub.f32 %v143, %v144
    %v146 = vand.u32 %v145, 4294901760
    %147 = vmatpush.msra.mxu0 %v146
    %v148 = vand.u32 %v77, 4294901760
    %v149 = vsub.f32 %v77, %v148
    %v150 = vand.u32 %v149, 4294901760
    %v151 = vsub.f32 %v149, %v150
    %v152 = vand.u32 %v151, 4294901760
    %153 = vmatpush.msra.mxu0 %v152
    %v154 = vand.u32 %v76, 4294901760
    %v155 = vsub.f32 %v76, %v154
    %v156 = vand.u32 %v155, 4294901760
    %v157 = vsub.f32 %v155, %v156
    %v158 = vand.u32 %v157, 4294901760
    %159 = vmatpush.msra.mxu0 %v158
    %v160 = vand.u32 %v75, 4294901760
    %v161 = vsub.f32 %v75, %v160
    %v162 = vand.u32 %v161, 4294901760
    %v163 = vsub.f32 %v161, %v162
    %v164 = vand.u32 %v163, 4294901760
    %165 = vmatpush.msra.mxu0 %v164
    %v166 = vand.u32 %v74, 4294901760
    %v167 = vsub.f32 %v74, %v166
    %v168 = vand.u32 %v167, 4294901760
    %v169 = vsub.f32 %v167, %v168
    %v170 = vand.u32 %v169, 4294901760
    %171 = vmatpush.msra.mxu0 %v170
    %v172 = vand.u32 %v73, 4294901760
    %v173 = vsub.f32 %v73, %v172
    %v174 = vand.u32 %v173, 4294901760
    %v175 = vsub.f32 %v173, %v174
    %v176 = vand.u32 %v175, 4294901760
    %177 = vmatpush.msra.mxu0 %v176
    %v178 = vand.u32 %v72, 4294901760
    %v179 = vsub.f32 %v72, %v178
    %v180 = vand.u32 %v179, 4294901760
    %v181 = vsub.f32 %v179, %v180
    %v182 = vand.u32 %v181, 4294901760
    %183 = vmatpush.msra.mxu0 %v182
    %v184 = vand.u32 %v71, 4294901760
    %v185 = vsub.f32 %v71, %v184
    %v186 = vand.u32 %v185, 4294901760
    %v187 = vsub.f32 %v185, %v186
    %v188 = vand.u32 %v187, 4294901760
    %189 = vmatpush.msra.mxu0 %v188
    %v190 = vand.u32 %v70, 4294901760
    %v191 = vsub.f32 %v70, %v190
    %v192 = vand.u32 %v191, 4294901760
    %v193 = vsub.f32 %v191, %v192
    %v194 = vand.u32 %v193, 4294901760
    %195 = vmatpush.msra.mxu0 %v194
    %v196 = vand.u32 %v69, 4294901760
    %v197 = vsub.f32 %v69, %v196
    %v198 = vand.u32 %v197, 4294901760
    %v199 = vsub.f32 %v197, %v198
    %v200 = vand.u32 %v199, 4294901760
    %201 = vmatpush.msra.mxu0 %v200
    %v202 = vand.u32 %v68, 4294901760
    %v203 = vsub.f32 %v68, %v202
    %v204 = vand.u32 %v203, 4294901760
    %v205 = vsub.f32 %v203, %v204
    %v206 = vand.u32 %v205, 4294901760
    %207 = vmatpush.msra.mxu0 %v206
    %v208 = vand.u32 %v67, 4294901760
    %v209 = vsub.f32 %v67, %v208
    %v210 = vand.u32 %v209, 4294901760
    %v211 = vsub.f32 %v209, %v210
    %v212 = vand.u32 %v211, 4294901760
    %213 = vmatpush.msra.mxu0 %v212
    %v214 = vand.u32 %v66, 4294901760
    %v215 = vsub.f32 %v66, %v214
    %v216 = vand.u32 %v215, 4294901760
    %v217 = vsub.f32 %v215, %v216
    %v218 = vand.u32 %v217, 4294901760
    %219 = vmatpush.msra.mxu0 %v218
    %v220 = vand.u32 %v65, 4294901760
    %v221 = vsub.f32 %v65, %v220
    %v222 = vand.u32 %v221, 4294901760
    %v223 = vsub.f32 %v221, %v222
    %v224 = vand.u32 %v223, 4294901760
    %225 = vmatpush.msra.mxu0 %v224
    %v226 = vand.u32 %v63, 4294901760
    %227 = vmatmul.f32.gmra.mxu0 %v226
    %v228 = vpop.f32.mrf.mxu0
    %v229 = vadd.f32 %v120, %v228
    %v230 = vand.u32 %v64, 4294901760
    %231 = vmatmul.f32.gmra.mxu0 %v230
    %v232 = vpop.f32.mrf.mxu0
    %v233 = vadd.f32 %v128, %v232
    %234 = vdwg.mxu0
    %v235 = vand.u32 %v80, 4294901760
    %v236 = vsub.f32 %v80, %v235
    %237 = vmatpush.msra.mxu0 %v236
    %v238 = vand.u32 %v79, 4294901760
    %v239 = vsub.f32 %v79, %v238
    %240 = vmatpush.msra.mxu0 %v239
    %v241 = vand.u32 %v78, 4294901760
    %v242 = vsub.f32 %v78, %v241
    %243 = vmatpush.msra.mxu0 %v242
    %v244 = vand.u32 %v77, 4294901760
    %v245 = vsub.f32 %v77, %v244
    %246 = vmatpush.msra.mxu0 %v245
    %v247 = vand.u32 %v76, 4294901760
    %v248 = vsub.f32 %v76, %v247
    %249 = vmatpush.msra.mxu0 %v248
    %v250 = vand.u32 %v75, 4294901760
    %v251 = vsub.f32 %v75, %v250
    %252 = vmatpush.msra.mxu0 %v251
    %v253 = vand.u32 %v74, 4294901760
    %v254 = vsub.f32 %v74, %v253
    %255 = vmatpush.msra.mxu0 %v254
    %v256 = vand.u32 %v73, 4294901760
    %v257 = vsub.f32 %v73, %v256
    %258 = vmatpush.msra.mxu0 %v257
    %v259 = vand.u32 %v72, 4294901760
    %v260 = vsub.f32 %v72, %v259
    %261 = vmatpush.msra.mxu0 %v260
    %v262 = vand.u32 %v71, 4294901760
    %v263 = vsub.f32 %v71, %v262
    %264 = vmatpush.msra.mxu0 %v263
    %v265 = vand.u32 %v70, 4294901760
    %v266 = vsub.f32 %v70, %v265
    %267 = vmatpush.msra.mxu0 %v266
    %v268 = vand.u32 %v69, 4294901760
    %v269 = vsub.f32 %v69, %v268
    %270 = vmatpush.msra.mxu0 %v269
    %v271 = vand.u32 %v68, 4294901760
    %v272 = vsub.f32 %v68, %v271
    %273 = vmatpush.msra.mxu0 %v272
    %v274 = vand.u32 %v67, 4294901760
    %v275 = vsub.f32 %v67, %v274
    %276 = vmatpush.msra.mxu0 %v275
    %v277 = vand.u32 %v66, 4294901760
    %v278 = vsub.f32 %v66, %v277
    %279 = vmatpush.msra.mxu0 %v278
    %v280 = vand.u32 %v65, 4294901760
    %v281 = vsub.f32 %v65, %v280
    %282 = vmatpush.msra.mxu0 %v281
    %v283 = vand.u32 %v63, 4294901760
    %v284 = vsub.f32 %v63, %v283
    %285 = vmatmul.f32.gmra.mxu0 %v284
    %v286 = vpop.f32.mrf.mxu0
    %v287 = vadd.f32 %v229, %v286
    %v288 = vand.u32 %v64, 4294901760
    %v289 = vsub.f32 %v64, %v288
    %290 = vmatmul.f32.gmra.mxu0 %v289
    %v291 = vpop.f32.mrf.mxu0
    %v292 = vadd.f32 %v233, %v291
    %293 = vdwg.mxu0
    %v294 = vand.u32 %v80, 4294901760
    %295 = vmatpush.msra.mxu0 %v294
    %v296 = vand.u32 %v79, 4294901760
    %297 = vmatpush.msra.mxu0 %v296
    %v298 = vand.u32 %v78, 4294901760
    %299 = vmatpush.msra.mxu0 %v298
    %v300 = vand.u32 %v77, 4294901760
    %301 = vmatpush.msra.mxu0 %v300
    %v302 = vand.u32 %v76, 4294901760
    %303 = vmatpush.msra.mxu0 %v302
    %v304 = vand.u32 %v75, 4294901760
    %305 = vmatpush.msra.mxu0 %v304
    %v306 = vand.u32 %v74, 4294901760
    %307 = vmatpush.msra.mxu0 %v306
    %v308 = vand.u32 %v73, 4294901760
    %309 = vmatpush.msra.mxu0 %v308
    %v310 = vand.u32 %v72, 4294901760
    %311 = vmatpush.msra.mxu0 %v310
    %v312 = vand.u32 %v71, 4294901760
    %313 = vmatpush.msra.mxu0 %v312
    %v314 = vand.u32 %v70, 4294901760
    %315 = vmatpush.msra.mxu0 %v314
    %v316 = vand.u32 %v69, 4294901760
    %317 = vmatpush.msra.mxu0 %v316
    %v318 = vand.u32 %v68, 4294901760
    %319 = vmatpush.msra.mxu0 %v318
    %v320 = vand.u32 %v67, 4294901760
    %321 = vmatpush.msra.mxu0 %v320
    %v322 = vand.u32 %v66, 4294901760
    %323 = vmatpush.msra.mxu0 %v322
    %v324 = vand.u32 %v65, 4294901760
    %325 = vmatpush.msra.mxu0 %v324
    %v326 = vand.u32 %v63, 4294901760
    %v327 = vsub.f32 %v63, %v326
    %v328 = vand.u32 %v327, 4294901760
    %329 = vmatmul.f32.gmra.mxu0 %v328
    %v330 = vpop.f32.mrf.mxu0
    %v331 = vadd.f32 %v287, %v330
    %v332 = vand.u32 %v64, 4294901760
    %v333 = vsub.f32 %v64, %v332
    %v334 = vand.u32 %v333, 4294901760
    %335 = vmatmul.f32.gmra.mxu0 %v334
    %v336 = vpop.f32.mrf.mxu0
    %v337 = vadd.f32 %v292, %v336
    %338 = vdwg.mxu0
    %v339 = vand.u32 %v80, 4294901760
    %v340 = vsub.f32 %v80, %v339
    %v341 = vand.u32 %v340, 4294901760
    %342 = vmatpush.msra.mxu0 %v341
    %v343 = vand.u32 %v79, 4294901760
    %v344 = vsub.f32 %v79, %v343
    %v345 = vand.u32 %v344, 4294901760
    %346 = vmatpush.msra.mxu0 %v345
    %v347 = vand.u32 %v78, 4294901760
    %v348 = vsub.f32 %v78, %v347
    %v349 = vand.u32 %v348, 4294901760
    %350 = vmatpush.msra.mxu0 %v349
    %v351 = vand.u32 %v77, 4294901760
    %v352 = vsub.f32 %v77, %v351
    %v353 = vand.u32 %v352, 4294901760
    %354 = vmatpush.msra.mxu0 %v353
    %v355 = vand.u32 %v76, 4294901760
    %v356 = vsub.f32 %v76, %v355
    %v357 = vand.u32 %v356, 4294901760
    %358 = vmatpush.msra.mxu0 %v357
    %v359 = vand.u32 %v75, 4294901760
    %v360 = vsub.f32 %v75, %v359
    %v361 = vand.u32 %v360, 4294901760
    %362 = vmatpush.msra.mxu0 %v361
    %v363 = vand.u32 %v74, 4294901760
    %v364 = vsub.f32 %v74, %v363
    %v365 = vand.u32 %v364, 4294901760
    %366 = vmatpush.msra.mxu0 %v365
    %v367 = vand.u32 %v73, 4294901760
    %v368 = vsub.f32 %v73, %v367
    %v369 = vand.u32 %v368, 4294901760
    %370 = vmatpush.msra.mxu0 %v369
    %v371 = vand.u32 %v72, 4294901760
    %v372 = vsub.f32 %v72, %v371
    %v373 = vand.u32 %v372, 4294901760
    %374 = vmatpush.msra.mxu0 %v373
    %v375 = vand.u32 %v71, 4294901760
    %v376 = vsub.f32 %v71, %v375
    %v377 = vand.u32 %v376, 4294901760
    %378 = vmatpush.msra.mxu0 %v377
    %v379 = vand.u32 %v70, 4294901760
    %v380 = vsub.f32 %v70, %v379
    %v381 = vand.u32 %v380, 4294901760
    %382 = vmatpush.msra.mxu0 %v381
    %v383 = vand.u32 %v69, 4294901760
    %v384 = vsub.f32 %v69, %v383
    %v385 = vand.u32 %v384, 4294901760
    %386 = vmatpush.msra.mxu0 %v385
    %v387 = vand.u32 %v68, 4294901760
    %v388 = vsub.f32 %v68, %v387
    %v389 = vand.u32 %v388, 4294901760
    %390 = vmatpush.msra.mxu0 %v389
    %v391 = vand.u32 %v67, 4294901760
    %v392 = vsub.f32 %v67, %v391
    %v393 = vand.u32 %v392, 4294901760
    %394 = vmatpush.msra.mxu0 %v393
    %v395 = vand.u32 %v66, 4294901760
    %v396 = vsub.f32 %v66, %v395
    %v397 = vand.u32 %v396, 4294901760
    %398 = vmatpush.msra.mxu0 %v397
    %v399 = vand.u32 %v65, 4294901760
    %v400 = vsub.f32 %v65, %v399
    %v401 = vand.u32 %v400, 4294901760
    %402 = vmatpush.msra.mxu0 %v401
    %v403 = vand.u32 %v63, 4294901760
    %404 = vmatmul.f32.gmra.mxu0 %v403
    %v405 = vpop.f32.mrf.mxu0
    %v406 = vadd.f32 %v331, %v405
    %v407 = vand.u32 %v64, 4294901760
    %408 = vmatmul.f32.gmra.mxu0 %v407
    %v409 = vpop.f32.mrf.mxu0
    %v410 = vadd.f32 %v337, %v409
    %411 = vdwg.mxu0
    %v412 = vand.u32 %v80, 4294901760
    %413 = vmatpush.msra.mxu0 %v412
    %v414 = vand.u32 %v79, 4294901760
    %415 = vmatpush.msra.mxu0 %v414
    %v416 = vand.u32 %v78, 4294901760
    %417 = vmatpush.msra.mxu0 %v416
    %v418 = vand.u32 %v77, 4294901760
    %419 = vmatpush.msra.mxu0 %v418
    %v420 = vand.u32 %v76, 4294901760
    %421 = vmatpush.msra.mxu0 %v420
    %v422 = vand.u32 %v75, 4294901760
    %423 = vmatpush.msra.mxu0 %v422
    %v424 = vand.u32 %v74, 4294901760
    %425 = vmatpush.msra.mxu0 %v424
    %v426 = vand.u32 %v73, 4294901760
    %427 = vmatpush.msra.mxu0 %v426
    %v428 = vand.u32 %v72, 4294901760
    %429 = vmatpush.msra.mxu0 %v428
    %v430 = vand.u32 %v71, 4294901760
    %431 = vmatpush.msra.mxu0 %v430
    %v432 = vand.u32 %v70, 4294901760
    %433 = vmatpush.msra.mxu0 %v432
    %v434 = vand.u32 %v69, 4294901760
    %435 = vmatpush.msra.mxu0 %v434
    %v436 = vand.u32 %v68, 4294901760
    %437 = vmatpush.msra.mxu0 %v436
    %v438 = vand.u32 %v67, 4294901760
    %439 = vmatpush.msra.mxu0 %v438
    %v440 = vand.u32 %v66, 4294901760
    %441 = vmatpush.msra.mxu0 %v440
    %v442 = vand.u32 %v65, 4294901760
    %443 = vmatpush.msra.mxu0 %v442
    %v444 = vand.u32 %v63, 4294901760
    %445 = vmatmul.f32.gmra.mxu0 %v444
    %v446 = vpop.f32.mrf.mxu0
    %v447 = vadd.f32 %v406, %v446
    %v448 = vand.u32 %v64, 4294901760
    %449 = vmatmul.f32.gmra.mxu0 %v448
    %v450 = vpop.f32.mrf.mxu0
    %v451 = vadd.f32 %v410, %v450
    %452 = vdwg.mxu0
    %v453 = vmul.f32 %v447, 0.25
    %v454 = vmul.f32 %v451, 0.25
    %v455 = vsub.f32 %v63, %v453
    %v456 = vsub.f32 %v64, %v454
    %v457 = vmul.f32 %v455, %v455
    %v458 = vmul.f32 %v456, %v456
    %v459 = vand.u32 %v80, 4294901760
    %460 = vmatpush.msra.mxu0 %v459
    %v461 = vand.u32 %v79, 4294901760
    %462 = vmatpush.msra.mxu0 %v461
    %v463 = vand.u32 %v78, 4294901760
    %464 = vmatpush.msra.mxu0 %v463
    %v465 = vand.u32 %v77, 4294901760
    %466 = vmatpush.msra.mxu0 %v465
    %v467 = vand.u32 %v76, 4294901760
    %468 = vmatpush.msra.mxu0 %v467
    %v469 = vand.u32 %v75, 4294901760
    %470 = vmatpush.msra.mxu0 %v469
    %v471 = vand.u32 %v74, 4294901760
    %472 = vmatpush.msra.mxu0 %v471
    %v473 = vand.u32 %v73, 4294901760
    %474 = vmatpush.msra.mxu0 %v473
    %v475 = vand.u32 %v72, 4294901760
    %476 = vmatpush.msra.mxu0 %v475
    %v477 = vand.u32 %v71, 4294901760
    %478 = vmatpush.msra.mxu0 %v477
    %v479 = vand.u32 %v70, 4294901760
    %480 = vmatpush.msra.mxu0 %v479
    %v481 = vand.u32 %v69, 4294901760
    %482 = vmatpush.msra.mxu0 %v481
    %v483 = vand.u32 %v68, 4294901760
    %484 = vmatpush.msra.mxu0 %v483
    %v485 = vand.u32 %v67, 4294901760
    %486 = vmatpush.msra.mxu0 %v485
    %v487 = vand.u32 %v66, 4294901760
    %488 = vmatpush.msra.mxu0 %v487
    %v489 = vand.u32 %v65, 4294901760
    %490 = vmatpush.msra.mxu0 %v489
    %v491 = vand.u32 %v457, 4294901760
    %v492 = vsub.f32 %v457, %v491
    %v493 = vand.u32 %v492, 4294901760
    %v494 = vsub.f32 %v492, %v493
    %v495 = vand.u32 %v494, 4294901760
    %496 = vmatmul.f32.gmra.mxu0 %v495
    %v497 = vpop.f32.mrf.mxu0
    %v498 = vadd.f32 0.0, %v497
    %v499 = vand.u32 %v458, 4294901760
    %v500 = vsub.f32 %v458, %v499
    %v501 = vand.u32 %v500, 4294901760
    %v502 = vsub.f32 %v500, %v501
    %v503 = vand.u32 %v502, 4294901760
    %504 = vmatmul.f32.gmra.mxu0 %v503
    %v505 = vpop.f32.mrf.mxu0
    %v506 = vadd.f32 0.0, %v505
    %507 = vdwg.mxu0
    %v508 = vand.u32 %v80, 4294901760
    %v509 = vsub.f32 %v80, %v508
    %v510 = vand.u32 %v509, 4294901760
    %v511 = vsub.f32 %v509, %v510
    %v512 = vand.u32 %v511, 4294901760
    %513 = vmatpush.msra.mxu0 %v512
    %v514 = vand.u32 %v79, 4294901760
    %v515 = vsub.f32 %v79, %v514
    %v516 = vand.u32 %v515, 4294901760
    %v517 = vsub.f32 %v515, %v516
    %v518 = vand.u32 %v517, 4294901760
    %519 = vmatpush.msra.mxu0 %v518
    %v520 = vand.u32 %v78, 4294901760
    %v521 = vsub.f32 %v78, %v520
    %v522 = vand.u32 %v521, 4294901760
    %v523 = vsub.f32 %v521, %v522
    %v524 = vand.u32 %v523, 4294901760
    %525 = vmatpush.msra.mxu0 %v524
    %v526 = vand.u32 %v77, 4294901760
    %v527 = vsub.f32 %v77, %v526
    %v528 = vand.u32 %v527, 4294901760
    %v529 = vsub.f32 %v527, %v528
    %v530 = vand.u32 %v529, 4294901760
    %531 = vmatpush.msra.mxu0 %v530
    %v532 = vand.u32 %v76, 4294901760
    %v533 = vsub.f32 %v76, %v532
    %v534 = vand.u32 %v533, 4294901760
    %v535 = vsub.f32 %v533, %v534
    %v536 = vand.u32 %v535, 4294901760
    %537 = vmatpush.msra.mxu0 %v536
    %v538 = vand.u32 %v75, 4294901760
    %v539 = vsub.f32 %v75, %v538
    %v540 = vand.u32 %v539, 4294901760
    %v541 = vsub.f32 %v539, %v540
    %v542 = vand.u32 %v541, 4294901760
    %543 = vmatpush.msra.mxu0 %v542
    %v544 = vand.u32 %v74, 4294901760
    %v545 = vsub.f32 %v74, %v544
    %v546 = vand.u32 %v545, 4294901760
    %v547 = vsub.f32 %v545, %v546
    %v548 = vand.u32 %v547, 4294901760
    %549 = vmatpush.msra.mxu0 %v548
    %v550 = vand.u32 %v73, 4294901760
    %v551 = vsub.f32 %v73, %v550
    %v552 = vand.u32 %v551, 4294901760
    %v553 = vsub.f32 %v551, %v552
    %v554 = vand.u32 %v553, 4294901760
    %555 = vmatpush.msra.mxu0 %v554
    %v556 = vand.u32 %v72, 4294901760
    %v557 = vsub.f32 %v72, %v556
    %v558 = vand.u32 %v557, 4294901760
    %v559 = vsub.f32 %v557, %v558
    %v560 = vand.u32 %v559, 4294901760
    %561 = vmatpush.msra.mxu0 %v560
    %v562 = vand.u32 %v71, 4294901760
    %v563 = vsub.f32 %v71, %v562
    %v564 = vand.u32 %v563, 4294901760
    %v565 = vsub.f32 %v563, %v564
    %v566 = vand.u32 %v565, 4294901760
    %567 = vmatpush.msra.mxu0 %v566
    %v568 = vand.u32 %v70, 4294901760
    %v569 = vsub.f32 %v70, %v568
    %v570 = vand.u32 %v569, 4294901760
    %v571 = vsub.f32 %v569, %v570
    %v572 = vand.u32 %v571, 4294901760
    %573 = vmatpush.msra.mxu0 %v572
    %v574 = vand.u32 %v69, 4294901760
    %v575 = vsub.f32 %v69, %v574
    %v576 = vand.u32 %v575, 4294901760
    %v577 = vsub.f32 %v575, %v576
    %v578 = vand.u32 %v577, 4294901760
    %579 = vmatpush.msra.mxu0 %v578
    %v580 = vand.u32 %v68, 4294901760
    %v581 = vsub.f32 %v68, %v580
    %v582 = vand.u32 %v581, 4294901760
    %v583 = vsub.f32 %v581, %v582
    %v584 = vand.u32 %v583, 4294901760
    %585 = vmatpush.msra.mxu0 %v584
    %v586 = vand.u32 %v67, 4294901760
    %v587 = vsub.f32 %v67, %v586
    %v588 = vand.u32 %v587, 4294901760
    %v589 = vsub.f32 %v587, %v588
    %v590 = vand.u32 %v589, 4294901760
    %591 = vmatpush.msra.mxu0 %v590
    %v592 = vand.u32 %v66, 4294901760
    %v593 = vsub.f32 %v66, %v592
    %v594 = vand.u32 %v593, 4294901760
    %v595 = vsub.f32 %v593, %v594
    %v596 = vand.u32 %v595, 4294901760
    %597 = vmatpush.msra.mxu0 %v596
    %v598 = vand.u32 %v65, 4294901760
    %v599 = vsub.f32 %v65, %v598
    %v600 = vand.u32 %v599, 4294901760
    %v601 = vsub.f32 %v599, %v600
    %v602 = vand.u32 %v601, 4294901760
    %603 = vmatpush.msra.mxu0 %v602
    %v604 = vand.u32 %v457, 4294901760
    %605 = vmatmul.f32.gmra.mxu0 %v604
    %v606 = vpop.f32.mrf.mxu0
    %v607 = vadd.f32 %v498, %v606
    %v608 = vand.u32 %v458, 4294901760
    %609 = vmatmul.f32.gmra.mxu0 %v608
    %v610 = vpop.f32.mrf.mxu0
    %v611 = vadd.f32 %v506, %v610
    %612 = vdwg.mxu0
    %v613 = vand.u32 %v80, 4294901760
    %v614 = vsub.f32 %v80, %v613
    %615 = vmatpush.msra.mxu0 %v614
    %v616 = vand.u32 %v79, 4294901760
    %v617 = vsub.f32 %v79, %v616
    %618 = vmatpush.msra.mxu0 %v617
    %v619 = vand.u32 %v78, 4294901760
    %v620 = vsub.f32 %v78, %v619
    %621 = vmatpush.msra.mxu0 %v620
    %v622 = vand.u32 %v77, 4294901760
    %v623 = vsub.f32 %v77, %v622
    %624 = vmatpush.msra.mxu0 %v623
    %v625 = vand.u32 %v76, 4294901760
    %v626 = vsub.f32 %v76, %v625
    %627 = vmatpush.msra.mxu0 %v626
    %v628 = vand.u32 %v75, 4294901760
    %v629 = vsub.f32 %v75, %v628
    %630 = vmatpush.msra.mxu0 %v629
    %v631 = vand.u32 %v74, 4294901760
    %v632 = vsub.f32 %v74, %v631
    %633 = vmatpush.msra.mxu0 %v632
    %v634 = vand.u32 %v73, 4294901760
    %v635 = vsub.f32 %v73, %v634
    %636 = vmatpush.msra.mxu0 %v635
    %v637 = vand.u32 %v72, 4294901760
    %v638 = vsub.f32 %v72, %v637
    %639 = vmatpush.msra.mxu0 %v638
    %v640 = vand.u32 %v71, 4294901760
    %v641 = vsub.f32 %v71, %v640
    %642 = vmatpush.msra.mxu0 %v641
    %v643 = vand.u32 %v70, 4294901760
    %v644 = vsub.f32 %v70, %v643
    %645 = vmatpush.msra.mxu0 %v644
    %v646 = vand.u32 %v69, 4294901760
    %v647 = vsub.f32 %v69, %v646
    %648 = vmatpush.msra.mxu0 %v647
    %v649 = vand.u32 %v68, 4294901760
    %v650 = vsub.f32 %v68, %v649
    %651 = vmatpush.msra.mxu0 %v650
    %v652 = vand.u32 %v67, 4294901760
    %v653 = vsub.f32 %v67, %v652
    %654 = vmatpush.msra.mxu0 %v653
    %v655 = vand.u32 %v66, 4294901760
    %v656 = vsub.f32 %v66, %v655
    %657 = vmatpush.msra.mxu0 %v656
    %v658 = vand.u32 %v65, 4294901760
    %v659 = vsub.f32 %v65, %v658
    %660 = vmatpush.msra.mxu0 %v659
    %v661 = vand.u32 %v457, 4294901760
    %v662 = vsub.f32 %v457, %v661
    %663 = vmatmul.f32.gmra.mxu0 %v662
    %v664 = vpop.f32.mrf.mxu0
    %v665 = vadd.f32 %v607, %v664
    %v666 = vand.u32 %v458, 4294901760
    %v667 = vsub.f32 %v458, %v666
    %668 = vmatmul.f32.gmra.mxu0 %v667
    %v669 = vpop.f32.mrf.mxu0
    %v670 = vadd.f32 %v611, %v669
    %671 = vdwg.mxu0
    %v672 = vand.u32 %v80, 4294901760
    %673 = vmatpush.msra.mxu0 %v672
    %v674 = vand.u32 %v79, 4294901760
    %675 = vmatpush.msra.mxu0 %v674
    %v676 = vand.u32 %v78, 4294901760
    %677 = vmatpush.msra.mxu0 %v676
    %v678 = vand.u32 %v77, 4294901760
    %679 = vmatpush.msra.mxu0 %v678
    %v680 = vand.u32 %v76, 4294901760
    %681 = vmatpush.msra.mxu0 %v680
    %v682 = vand.u32 %v75, 4294901760
    %683 = vmatpush.msra.mxu0 %v682
    %v684 = vand.u32 %v74, 4294901760
    %685 = vmatpush.msra.mxu0 %v684
    %v686 = vand.u32 %v73, 4294901760
    %687 = vmatpush.msra.mxu0 %v686
    %v688 = vand.u32 %v72, 4294901760
    %689 = vmatpush.msra.mxu0 %v688
    %v690 = vand.u32 %v71, 4294901760
    %691 = vmatpush.msra.mxu0 %v690
    %v692 = vand.u32 %v70, 4294901760
    %693 = vmatpush.msra.mxu0 %v692
    %v694 = vand.u32 %v69, 4294901760
    %695 = vmatpush.msra.mxu0 %v694
    %v696 = vand.u32 %v68, 4294901760
    %697 = vmatpush.msra.mxu0 %v696
    %v698 = vand.u32 %v67, 4294901760
    %699 = vmatpush.msra.mxu0 %v698
    %v700 = vand.u32 %v66, 4294901760
    %701 = vmatpush.msra.mxu0 %v700
    %v702 = vand.u32 %v65, 4294901760
    %703 = vmatpush.msra.mxu0 %v702
    %v704 = vand.u32 %v457, 4294901760
    %v705 = vsub.f32 %v457, %v704
    %v706 = vand.u32 %v705, 4294901760
    %707 = vmatmul.f32.gmra.mxu0 %v706
    %v708 = vpop.f32.mrf.mxu0
    %v709 = vadd.f32 %v665, %v708
    %v710 = vand.u32 %v458, 4294901760
    %v711 = vsub.f32 %v458, %v710
    %v712 = vand.u32 %v711, 4294901760
    %713 = vmatmul.f32.gmra.mxu0 %v712
    %v714 = vpop.f32.mrf.mxu0
    %v715 = vadd.f32 %v670, %v714
    %716 = vdwg.mxu0
    %v717 = vand.u32 %v80, 4294901760
    %v718 = vsub.f32 %v80, %v717
    %v719 = vand.u32 %v718, 4294901760
    %720 = vmatpush.msra.mxu0 %v719
    %v721 = vand.u32 %v79, 4294901760
    %v722 = vsub.f32 %v79, %v721
    %v723 = vand.u32 %v722, 4294901760
    %724 = vmatpush.msra.mxu0 %v723
    %v725 = vand.u32 %v78, 4294901760
    %v726 = vsub.f32 %v78, %v725
    %v727 = vand.u32 %v726, 4294901760
    %728 = vmatpush.msra.mxu0 %v727
    %v729 = vand.u32 %v77, 4294901760
    %v730 = vsub.f32 %v77, %v729
    %v731 = vand.u32 %v730, 4294901760
    %732 = vmatpush.msra.mxu0 %v731
    %v733 = vand.u32 %v76, 4294901760
    %v734 = vsub.f32 %v76, %v733
    %v735 = vand.u32 %v734, 4294901760
    %736 = vmatpush.msra.mxu0 %v735
    %v737 = vand.u32 %v75, 4294901760
    %v738 = vsub.f32 %v75, %v737
    %v739 = vand.u32 %v738, 4294901760
    %740 = vmatpush.msra.mxu0 %v739
    %v741 = vand.u32 %v74, 4294901760
    %v742 = vsub.f32 %v74, %v741
    %v743 = vand.u32 %v742, 4294901760
    %744 = vmatpush.msra.mxu0 %v743
    %v745 = vand.u32 %v73, 4294901760
    %v746 = vsub.f32 %v73, %v745
    %v747 = vand.u32 %v746, 4294901760
    %748 = vmatpush.msra.mxu0 %v747
    %v749 = vand.u32 %v72, 4294901760
    %v750 = vsub.f32 %v72, %v749
    %v751 = vand.u32 %v750, 4294901760
    %752 = vmatpush.msra.mxu0 %v751
    %v753 = vand.u32 %v71, 4294901760
    %v754 = vsub.f32 %v71, %v753
    %v755 = vand.u32 %v754, 4294901760
    %756 = vmatpush.msra.mxu0 %v755
    %v757 = vand.u32 %v70, 4294901760
    %v758 = vsub.f32 %v70, %v757
    %v759 = vand.u32 %v758, 4294901760
    %760 = vmatpush.msra.mxu0 %v759
    %v761 = vand.u32 %v69, 4294901760
    %v762 = vsub.f32 %v69, %v761
    %v763 = vand.u32 %v762, 4294901760
    %764 = vmatpush.msra.mxu0 %v763
    %v765 = vand.u32 %v68, 4294901760
    %v766 = vsub.f32 %v68, %v765
    %v767 = vand.u32 %v766, 4294901760
    %768 = vmatpush.msra.mxu0 %v767
    %v769 = vand.u32 %v67, 4294901760
    %v770 = vsub.f32 %v67, %v769
    %v771 = vand.u32 %v770, 4294901760
    %772 = vmatpush.msra.mxu0 %v771
    %v773 = vand.u32 %v66, 4294901760
    %v774 = vsub.f32 %v66, %v773
    %v775 = vand.u32 %v774, 4294901760
    %776 = vmatpush.msra.mxu0 %v775
    %v777 = vand.u32 %v65, 4294901760
    %v778 = vsub.f32 %v65, %v777
    %v779 = vand.u32 %v778, 4294901760
    %780 = vmatpush.msra.mxu0 %v779
    %v781 = vand.u32 %v457, 4294901760
    %782 = vmatmul.f32.gmra.mxu0 %v781
    %v783 = vpop.f32.mrf.mxu0
    %v784 = vadd.f32 %v709, %v783
    %v785 = vand.u32 %v458, 4294901760
    %786 = vmatmul.f32.gmra.mxu0 %v785
    %v787 = vpop.f32.mrf.mxu0
    %v788 = vadd.f32 %v715, %v787
    %789 = vdwg.mxu0
    %v790 = vand.u32 %v80, 4294901760
    %791 = vmatpush.msra.mxu0 %v790
    %v792 = vand.u32 %v79, 4294901760
    %793 = vmatpush.msra.mxu0 %v792
    %v794 = vand.u32 %v78, 4294901760
    %795 = vmatpush.msra.mxu0 %v794
    %v796 = vand.u32 %v77, 4294901760
    %797 = vmatpush.msra.mxu0 %v796
    %v798 = vand.u32 %v76, 4294901760
    %799 = vmatpush.msra.mxu0 %v798
    %v800 = vand.u32 %v75, 4294901760
    %801 = vmatpush.msra.mxu0 %v800
    %v802 = vand.u32 %v74, 4294901760
    %803 = vmatpush.msra.mxu0 %v802
    %v804 = vand.u32 %v73, 4294901760
    %805 = vmatpush.msra.mxu0 %v804
    %v806 = vand.u32 %v72, 4294901760
    %807 = vmatpush.msra.mxu0 %v806
    %v808 = vand.u32 %v71, 4294901760
    %809 = vmatpush.msra.mxu0 %v808
    %v810 = vand.u32 %v70, 4294901760
    %811 = vmatpush.msra.mxu0 %v810
    %v812 = vand.u32 %v69, 4294901760
    %813 = vmatpush.msra.mxu0 %v812
    %v814 = vand.u32 %v68, 4294901760
    %815 = vmatpush.msra.mxu0 %v814
    %v816 = vand.u32 %v67, 4294901760
    %817 = vmatpush.msra.mxu0 %v816
    %v818 = vand.u32 %v66, 4294901760
    %819 = vmatpush.msra.mxu0 %v818
    %v820 = vand.u32 %v65, 4294901760
    %821 = vmatpush.msra.mxu0 %v820
    %v822 = vand.u32 %v457, 4294901760
    %823 = vmatmul.f32.gmra.mxu0 %v822
    %v824 = vpop.f32.mrf.mxu0
    %v825 = vadd.f32 %v784, %v824
    %v826 = vand.u32 %v458, 4294901760
    %827 = vmatmul.f32.gmra.mxu0 %v826
    %v828 = vpop.f32.mrf.mxu0
    %v829 = vadd.f32 %v788, %v828
    %830 = vdwg.mxu0
    %v831 = vmul.f32 %v825, 0.25
    %v832 = vmul.f32 %v829, 0.25
    %v833 = vadd.f32 %v831, 1e-06
    %v834 = vadd.f32 %v832, 1e-06
    %v835 = vrsqrt.pop %v833
    %v836 = vmul.f32 %v835, %v833
    %v837 = vmul.f32 %v836, %v835
    %v838 = vmul.f32 0.5, %v837
    %v839 = vsub.f32 1.5, %v838
    %v840 = vmul.f32 %v835, %v839
    %vm841 = vweird.f32 %v833
    %vm842 = vweird.f32 %v835
    %vm843 = vmor %vm841, %vm842
    %v844 = vsel %vm843, %v835, %v840
    %v845 = vrsqrt.pop %v834
    %v846 = vmul.f32 %v845, %v834
    %v847 = vmul.f32 %v846, %v845
    %v848 = vmul.f32 0.5, %v847
    %v849 = vsub.f32 1.5, %v848
    %v850 = vmul.f32 %v845, %v849
    %vm851 = vweird.f32 %v834
    %vm852 = vweird.f32 %v845
    %vm853 = vmor %vm851, %vm852
    %v854 = vsel %vm853, %v845, %v850
    %v855 = vmul.f32 %v455, %v844
    %v856 = vmul.f32 %v456, %v854
    %v857 = vld [vmem:[#allocation5] sm:$0x1]
    %v859 = vperm.slane %v857, 0
    %v861 = vmul.f32 %v855, %v859
    %v862 = vmul.f32 %v856, %v859
    %v863 = vld [vmem:[%s2] sm:$0x1]
    %v865 = vperm.slane %v863, 0
    %v867 = vadd.f32 %v861, %v865
    %v868 = vadd.f32 %v862, %v865
    %869 = vst [vmem:[#allocation8] sm:$0xff] %v867
    %870 = vst [vmem:[#allocation8 + $0x8] sm:$0xff] %v868
    // Predicated region
    $region30: #{tpu_custom_call.1} parent=1 // pred_check
      _
    $region31: #{tpu_custom_call.1} parent=1 // pred_check_branch
      %872 = sbr.rel (0) target = $region33
    $region32: #{tpu_custom_call.1} parent=1 // pred_region
      %874 = vsyncadd [#allocation4], 0
      %s875 = sshll.u32 [#allocation8], 4
      %s876 = int_to_ptr.vmem [resolvable:$true] %s875
      %s877 = sshll.u32 %s4, 4
      %s878 = int_to_ptr.hbm [resolvable:$true] %s877
      %883 = dma.vmem_to_hbm [thread:$0]  %s876, 256, %s878, [#allocation4], 128, 128, 8
    $region33: #{tpu_custom_call.1} parent=1 // pred_fallthru
      _
    // Predicated region
    $region34: #{tpu_custom_call.1} parent=1 // pred_check
      _
    $region35: #{tpu_custom_call.1} parent=1 // pred_check_branch
      %885 = sbr.rel (0) target = $region37
    $region36: #{tpu_custom_call.1} parent=1 // pred_region
      %887 = dma.done [#allocation4], 256
    $region37: #{tpu_custom_call.1} parent=1 // pred_fallthru
      _
    %888 = vsyncpa [#allocation3], 1
    %889 = vsyncpa [#allocation6], 1
    %890 = vsyncpa [#allocation4], 1

</llo_original>
